<compile_context>
chip_gen: v6e
topology: v6e:2x2x1
jax: 0.10.0
libtpu: 0.0.40
codegen_flags: <defaults>
</compile_context>

<pallas_src>
import functools

import jax
import jax.numpy as jnp
from jax.experimental import pallas as pl
from jax.experimental.pallas import tpu as pltpu


_NEG_INF = -1e30        # finite "minus infinity" for padded logit lanes
_GOLDEN = 0x9E3779B9


def _round_up(x, m):
    return ((x + m - 1) // m) * m


# ---------------------------------------------------------------------------
# Portable in-kernel counter-based PRNG (plain 32-bit VPU integer ops; works on
# real TPUs and in interpret mode, unlike pltpu.prng_*).
# ---------------------------------------------------------------------------
def _hash_u32(x):
    # "lowbias32" integer finalizer: 2 multiplies + 3 xor-shifts.
    x = x ^ (x >> 16)
    x = x * jnp.uint32(0x7FEB352D)
    x = x ^ (x >> 15)
    x = x * jnp.uint32(0x846CA68B)
    x = x ^ (x >> 16)
    return x


def _dropout(h, seed_ref, dropout_p):
    """h: [T, H] bf16 -> dropout(h) in the same dtype."""
    if dropout_p <= 0.0:
        return h
    t, hdim = h.shape
    # Per-tile scalar offset (scalar unit): folds the tile offset and the seed
    # mix, so the per-element vector work is iota*H + iota + add + lowbias32.
    pid_u = pl.program_id(0).astype(jnp.uint32)
    seed_u = seed_ref[0].astype(jnp.uint32)
    offset = pid_u * jnp.uint32(t * hdim) + seed_u * jnp.uint32(_GOLDEN)
    row = jax.lax.broadcasted_iota(jnp.int32, h.shape, 0)
    col = jax.lax.broadcasted_iota(jnp.int32, h.shape, 1)
    # NOTE: the uint32 counter wraps for N*H > 2^32 (distant tiles would reuse
    # masks); statistically harmless for dropout.
    ctr = (row * hdim + col).astype(jnp.uint32) + offset
    bits = _hash_u32(ctr)
    threshold = jnp.uint32(min(int(round(dropout_p * 4294967296.0)), 4294967295))
    keep = bits >= threshold
    scale = jnp.asarray(1.0 / (1.0 - dropout_p), dtype=h.dtype)
    return jnp.where(keep, h * scale, jnp.zeros_like(h))


# ---------------------------------------------------------------------------
# Kernels
# ---------------------------------------------------------------------------
def _compute_logits(seed_ref, h_ref, w_ref, b_ref, dropout_p):
    h = _dropout(h_ref[...], seed_ref, dropout_p)            # [T, H] bf16
    # bf16 operands into the MXU, f32 accumulation, bias added in f32.
    return jnp.dot(h, w_ref[...], preferred_element_type=jnp.float32) + b_ref[...]


def _classifier_kernel(seed_ref, h_ref, w_ref, b_ref, logits_ref, *, dropout_p):
    logits_ref[...] = _compute_logits(seed_ref, h_ref, w_ref, b_ref,
                                      dropout_p).astype(logits_ref.dtype)


def _fused_head_kernel(seed_ref, h_ref, w_ref, b_ref, labels_ref,
                       logits_ref, part_ref,
                       *, dropout_p, num_classes, n_rows, tile_rows):
    logits = _compute_logits(seed_ref, h_ref, w_ref, b_ref, dropout_p)  # f32
    logits_ref[...] = logits.astype(logits_ref.dtype)    # lane-dense bf16 store

    # ---- CrossEntropyLoss(ignore_index=-1): per-tile partial reduction ----
    labels = labels_ref[...]                              # [T, 1] int32
    row = jax.lax.broadcasted_iota(jnp.int32, labels.shape, 0)
    in_bounds = (pl.program_id(0) * tile_rows + row) < n_rows   # ragged last tile
    valid = (labels >= 0) & in_bounds                     # ignore_index = -1

    col = jax.lax.broadcasted_iota(jnp.int32, logits.shape, 1)
    z = jnp.where(col < num_classes, logits, _NEG_INF)    # mask padded lanes
    m = jnp.max(z, axis=-1, keepdims=True)
    lse = jnp.log(jnp.sum(jnp.exp(z - m), axis=-1, keepdims=True)) + m
    picked = jnp.sum(jnp.where(col == labels, logits, 0.0), axis=-1, keepdims=True)
    # where-select (not multiply) so NaN/Inf from garbage tail rows cannot leak.
    nll = jnp.where(valid, lse - picked, 0.0)             # [T, 1]

    nll_sum = jnp.sum(nll, axis=0, keepdims=True)                       # (1, 1)
    cnt_sum = jnp.sum(valid.astype(jnp.float32), axis=0, keepdims=True) # (1, 1)

    # Per-tile partials: lane 0 = sum of nll, lane 1 = count of valid labels.
    lane = jax.lax.broadcasted_iota(jnp.int32, (1, 128), 1)
    part_ref[0] = (jnp.where(lane == 0, nll_sum, 0.0)
                   + jnp.where(lane == 1, cnt_sum, 0.0)).astype(jnp.float32)


# ---------------------------------------------------------------------------
# pallas_call wrapper
# ---------------------------------------------------------------------------
def _pallas_ner_head(seed_arr, h2, w_pad, b_pad, labels2, *,
                     tile_n, num_classes, dropout_p):
    n, hidden = h2.shape
    c_pad = w_pad.shape[1]
    assert tile_n % 8 == 0
    # No wrapper-side row padding: either one full-array block, or fixed
    # 8-aligned tiles with a partial (masked) last tile.
    tile = n if n <= tile_n else tile_n
    grid = (pl.cdiv(n, tile),)

    smem = pltpu.MemorySpace.SMEM
    in_specs = [
        pl.BlockSpec(memory_space=smem),                    # seed (1,) in SMEM
        pl.BlockSpec((tile, hidden), lambda i: (i, 0)),     # activation rows (bf16)
        pl.BlockSpec((hidden, c_pad), lambda i: (0, 0)),    # W, resident (bf16)
        pl.BlockSpec((1, c_pad), lambda i: (0, 0)),         # bias, resident (f32)
    ]
    logits_spec = pl.BlockSpec((tile, c_pad), lambda i: (i, 0))
    logits_shape = jax.ShapeDtypeStruct((n, c_pad), jnp.bfloat16)
    cparams = pltpu.CompilerParams(dimension_semantics=("parallel",),
                                   vmem_limit_bytes=32 * 1024 * 1024)

    if labels2 is None:
        kernel = functools.partial(_classifier_kernel, dropout_p=dropout_p)
        return pl.pallas_call(
            kernel, grid=grid, out_shape=logits_shape,
            in_specs=in_specs, out_specs=logits_spec,
            compiler_params=cparams,
        )(seed_arr, h2, w_pad, b_pad)

    kernel = functools.partial(_fused_head_kernel, dropout_p=dropout_p,
                               num_classes=num_classes, n_rows=n, tile_rows=tile)
    return pl.pallas_call(
        kernel, grid=grid,
        out_shape=(logits_shape,
                   jax.ShapeDtypeStruct((grid[0], 1, 128), jnp.float32)),
        in_specs=in_specs + [pl.BlockSpec((tile, 1), lambda i: (i, 0))],
        out_specs=(logits_spec, pl.BlockSpec((1, 1, 128), lambda i: (i, 0, 0))),
        compiler_params=cparams,
    )(seed_arr, h2, w_pad, b_pad, labels2)


# ---------------------------------------------------------------------------
# NERModel.forward equivalent (jitted so all wrapper-side glue fuses)
# ---------------------------------------------------------------------------
@functools.partial(jax.jit, static_argnames=("dropout_p", "tile_n"))
def ner_model_forward(params, input_ids, attention_mask, labels=None, *,
                      dropout_p=0.1, seed=0, tile_n=2048):
    # TODO(synk): the pretrained AutoModel transformer encoder has no Pallas
    # equivalent; it is replaced by a deterministic embedding-lookup surrogate
    # with the attention mask applied to its output.  Everything NERModel
    # itself computes (dropout, classifier, loss) runs in the Pallas kernel.
    emb = params["embedding"].astype(jnp.bfloat16)
    h = jnp.take(emb, input_ids, axis=0)                        # [B, L, H] bf16
    h = h * attention_mask[..., None].astype(h.dtype)           # surrogate masking
    bsz, seq, hidden = h.shape
    n = bsz * seq
    c = params["cls_w"].shape[1]
    c_pad = _round_up(c, 128)                                   # lane-dense logits

    h2 = h.reshape(n, hidden)                                   # fuses with gather under jit
    w_pad = jnp.pad(params["cls_w"].astype(jnp.bfloat16), ((0, 0), (0, c_pad - c)))
    b_pad = jnp.pad(params["cls_b"].astype(jnp.float32), (0, c_pad - c)).reshape(1, c_pad)
    seed_arr = jnp.asarray(seed, dtype=jnp.int32).reshape(1)

    if labels is None:
        logits_pad = _pallas_ner_head(seed_arr, h2, w_pad, b_pad, None,
                                      tile_n=tile_n, num_classes=c,
                                      dropout_p=dropout_p)
        return (logits_pad[:, :c].astype(jnp.float32),)

    labels2 = labels.reshape(n, 1).astype(jnp.int32)
    logits_pad, parts = _pallas_ner_head(seed_arr, h2, w_pad, b_pad, labels2,
                                         tile_n=tile_n, num_classes=c,
                                         dropout_p=dropout_p)
    # Final reduction over per-tile partials in XLA (keeps the row-tile grid
    # axis "parallel"; on v7x tiles shard across both TensorCores).
    # NOTE: 0/0 -> NaN when every label is -1, matching torch CrossEntropyLoss.
    loss = jnp.sum(parts[:, 0, 0]) / jnp.sum(parts[:, 0, 1])
    logits = logits_pad[:, :c].astype(jnp.float32)
    return (loss, logits)


# ---------------------------------------------------------------------------
# Pure-JAX reference (dropout disabled) for a correctness sanity check.
# ---------------------------------------------------------------------------
def _reference_forward(params, input_ids, attention_mask, labels):
    emb = params["embedding"].astype(jnp.bfloat16)
    h = jnp.take(emb, input_ids, axis=0)
    h = h * attention_mask[..., None].astype(h.dtype)
    n = h.shape[0] * h.shape[1]
    h2 = h.reshape(n, -1)
    logits = jnp.dot(h2, params["cls_w"].astype(jnp.bfloat16),
                     preferred_element_type=jnp.float32) + params["cls_b"].astype(jnp.float32)
    lbl = labels.reshape(-1)
    logp = jax.nn.log_softmax(logits, axis=-1)
    valid = lbl >= 0
    picked = jnp.take_along_axis(logp, jnp.maximum(lbl, 0)[:, None], axis=1)[:, 0]
    loss = -jnp.sum(jnp.where(valid, picked, 0.0)) / jnp.sum(valid.astype(jnp.float32))
    return loss, logits


if __name__ == "__main__":
    B, L, H, C, VOCAB = 2, 8, 32, 4, 100
    DROPOUT_P = 0.1

    key = jax.random.PRNGKey(0)
    k_emb, k_w, k_b, k_ids, k_lab = jax.random.split(key, 5)

    params = {
        "embedding": jax.random.normal(k_emb, (VOCAB, H), dtype=jnp.float32) * 0.02,
        "cls_w": jax.random.normal(k_w, (H, C), dtype=jnp.float32) * 0.02,
        "cls_b": jax.random.normal(k_b, (C,), dtype=jnp.float32) * 0.02,
    }

    input_ids = jax.random.randint(k_ids, (B, L), 0, VOCAB, dtype=jnp.int32)
    attention_mask = jnp.ones((B, L), dtype=jnp.float32).at[:, L - 2:].set(0.0)
    labels = jax.random.randint(k_lab, (B, L), 0, C, dtype=jnp.int32)
    labels = labels.at[:, L - 2:].set(-1)    # padded positions ignored (ignore_index=-1)

    # Training-style forward (dropout active).
    loss, logits = ner_model_forward(params, input_ids, attention_mask, labels,
                                     dropout_p=DROPOUT_P, seed=0)
    jax.block_until_ready((loss, logits))
    assert logits.shape == (B * L, C)
    assert loss.shape == ()

    # Deterministic forward (dropout off) checked against a pure-JAX reference.
    loss0, logits0 = ner_model_forward(params, input_ids, attention_mask, labels,
                                       dropout_p=0.0, seed=0)
    ref_loss, ref_logits = _reference_forward(params, input_ids, attention_mask, labels)
    jax.block_until_ready((loss0, logits0))
    # Kernel writes logits back in bf16; round the reference the same way.
    ref_logits_b = ref_logits.astype(jnp.bfloat16).astype(jnp.float32)
    assert jnp.allclose(logits0, ref_logits_b, atol=1e-3, rtol=1e-2), "logits mismatch"
    assert jnp.allclose(loss0, ref_loss, atol=5e-3, rtol=1e-2), "loss mismatch"

    # No-labels path returns (logits,) like the original module.
    (logits_only,) = ner_model_forward(params, input_ids, attention_mask, None,
                                       dropout_p=0.0, seed=0)
    jax.block_until_ready(logits_only)
    assert logits_only.shape == (B * L, C)

    print("KERNEL_OK")
</pallas_src>

<mosaic_0001>
module attributes {stable_mosaic.version = 11 : i64} {
  func.func @_fused_head_kernel(%arg0: i32, %arg1: memref<1xi32, #tpu.memory_space<smem>>, %arg2: memref<16x32xbf16, #tpu.memory_space<vmem>>, %arg3: memref<32x128xbf16, #tpu.memory_space<vmem>>, %arg4: memref<1x128xf32, #tpu.memory_space<vmem>>, %arg5: memref<16x1xi32, #tpu.memory_space<vmem>>, %arg6: memref<16x128xbf16, #tpu.memory_space<vmem>>, %arg7: memref<1x1x128xf32, #tpu.memory_space<vmem>>) attributes {dimension_semantics = [#tpu.dimension_semantics<parallel>], iteration_bounds = array<i64: 1>, scalar_prefetch = 0 : i64, scratch_operands = 0 : i64, tpu.core_type = #tpu.core_type<tc>, window_params = [{transform_indices = @transform_0, window_bounds = array<i64: 1>}, {transform_indices = @transform_1, window_bounds = array<i64: 16, 32>}, {pipeline_mode = #tpu.pipeline_mode<synchronous>, transform_indices = @transform_2, window_bounds = array<i64: 32, 128>}, {pipeline_mode = #tpu.pipeline_mode<synchronous>, transform_indices = @transform_3, window_bounds = array<i64: 1, 128>}, {transform_indices = @transform_4, window_bounds = array<i64: 16, 1>}, {transform_indices = @transform_5, window_bounds = array<i64: 16, 128>}, {transform_indices = @transform_6, window_bounds = array<i64: 1, 1, 128>}]} {
    %c0 = arith.constant 0 : index
    %c0_0 = arith.constant 0 : index
    %0 = vector.load %arg2[%c0, %c0_0] : memref<16x32xbf16, #tpu.memory_space<vmem>>, vector<16x32xbf16>
    %c0_1 = arith.constant 0 : index
    %1 = memref.load %arg1[%c0_1] : memref<1xi32, #tpu.memory_space<smem>>
    %c512_i32 = arith.constant 512 : i32
    %2 = arith.muli %arg0, %c512_i32 : i32
    %c-1640531527_i32 = arith.constant -1640531527 : i32
    %3 = arith.muli %1, %c-1640531527_i32 : i32
    %4 = arith.addi %2, %3 : i32
    %5 = tpu.iota {dimensions = array<i32: 0>} : vector<16x32xi32>
    %6 = tpu.iota {dimensions = array<i32: 1>} : vector<16x32xi32>
    %c32_i32 = arith.constant 32 : i32
    %7 = vector.broadcast %c32_i32 : i32 to vector<16x32xi32>
    %8 = arith.muli %5, %7 : vector<16x32xi32>
    %9 = arith.addi %8, %6 : vector<16x32xi32>
    %10 = vector.broadcast %4 : i32 to vector<16x32xi32>
    %11 = arith.addi %9, %10 : vector<16x32xi32>
    %c16_i32 = arith.constant 16 : i32
    %12 = vector.broadcast %c16_i32 : i32 to vector<16x32xi32>
    %13 = arith.shrui %11, %12 : vector<16x32xi32>
    %14 = arith.xori %11, %13 : vector<16x32xi32>
    %c2146121005_i32 = arith.constant 2146121005 : i32
    %15 = vector.broadcast %c2146121005_i32 : i32 to vector<16x32xi32>
    %16 = arith.muli %14, %15 : vector<16x32xi32>
    %c15_i32 = arith.constant 15 : i32
    %17 = vector.broadcast %c15_i32 : i32 to vector<16x32xi32>
    %18 = arith.shrui %16, %17 : vector<16x32xi32>
    %19 = arith.xori %16, %18 : vector<16x32xi32>
    %c-2073254261_i32 = arith.constant -2073254261 : i32
    %20 = vector.broadcast %c-2073254261_i32 : i32 to vector<16x32xi32>
    %21 = arith.muli %19, %20 : vector<16x32xi32>
    %c16_i32_2 = arith.constant 16 : i32
    %22 = vector.broadcast %c16_i32_2 : i32 to vector<16x32xi32>
    %23 = arith.shrui %21, %22 : vector<16x32xi32>
    %24 = arith.xori %21, %23 : vector<16x32xi32>
    %c429496730_i32 = arith.constant 429496730 : i32
    %25 = vector.broadcast %c429496730_i32 : i32 to vector<16x32xi32>
    %26 = arith.cmpi uge, %24, %25 : vector<16x32xi32>
    %cst = arith.constant 1.109380e+00 : bf16
    %27 = vector.broadcast %cst : bf16 to vector<16x32xbf16>
    %28 = arith.mulf %0, %27 : vector<16x32xbf16>
    %cst_3 = arith.constant 0.000000e+00 : bf16
    %29 = vector.broadcast %cst_3 : bf16 to vector<16x32xbf16>
    %30 = arith.select %26, %28, %29 : vector<16x32xi1>, vector<16x32xbf16>
    %c0_4 = arith.constant 0 : index
    %c0_5 = arith.constant 0 : index
    %31 = vector.load %arg3[%c0_4, %c0_5] : memref<32x128xbf16, #tpu.memory_space<vmem>>, vector<32x128xbf16>
    %cst_6 = arith.constant dense<0.000000e+00> : vector<16x128xf32>
    %32 = tpu.matmul %30, %31, %cst_6 {dimension_numbers = #tpu.dot_dimension_numbers<[1], [0], [0], [1], [0, 0, 1, 1], [], []>} : vector<16x32xbf16>, vector<32x128xbf16>, vector<16x128xf32> -> vector<16x128xf32>
    %c0_7 = arith.constant 0 : index
    %c0_8 = arith.constant 0 : index
    %33 = vector.load %arg4[%c0_7, %c0_8] : memref<1x128xf32, #tpu.memory_space<vmem>>, vector<1x128xf32>
    %34 = vector.broadcast %33 : vector<1x128xf32> to vector<16x128xf32>
    %35 = arith.addf %32, %34 : vector<16x128xf32>
    %36 = arith.truncf %35 : vector<16x128xf32> to vector<16x128xbf16>
    %c0_9 = arith.constant 0 : index
    %c0_10 = arith.constant 0 : index
    %37 = vector.load %arg6[%c0_9, %c0_10] : memref<16x128xbf16, #tpu.memory_space<vmem>>, vector<16x128xbf16>
    tpu.vector_store %arg6[%c0_9, %c0_10], %36 {strides = array<i32>} : memref<16x128xbf16, #tpu.memory_space<vmem>>, vector<16x128xbf16>,
    %c0_11 = arith.constant 0 : index
    %c0_12 = arith.constant 0 : index
    %38 = vector.load %arg5[%c0_11, %c0_12] : memref<16x1xi32, #tpu.memory_space<vmem>>, vector<16x1xi32>
    %39 = tpu.iota {dimensions = array<i32: 0>} : vector<16x1xi32>
    %c16_i32_13 = arith.constant 16 : i32
    %40 = arith.muli %arg0, %c16_i32_13 : i32
    %41 = vector.broadcast %40 : i32 to vector<16x1xi32>
    %42 = arith.addi %41, %39 : vector<16x1xi32>
    %c16_i32_14 = arith.constant 16 : i32
    %43 = vector.broadcast %c16_i32_14 : i32 to vector<16x1xi32>
    %44 = arith.cmpi slt, %42, %43 : vector<16x1xi32>
    %c0_i32 = arith.constant 0 : i32
    %45 = vector.broadcast %c0_i32 : i32 to vector<16x1xi32>
    %46 = arith.cmpi sge, %38, %45 : vector<16x1xi32>
    %47 = arith.andi %46, %44 : vector<16x1xi1>
    %48 = tpu.iota {dimensions = array<i32: 1>} : vector<16x128xi32>
    %c4_i32 = arith.constant 4 : i32
    %49 = vector.broadcast %c4_i32 : i32 to vector<16x128xi32>
    %50 = arith.cmpi slt, %48, %49 : vector<16x128xi32>
    %cst_15 = arith.constant -1.000000e+30 : f32
    %51 = vector.broadcast %cst_15 : f32 to vector<16x128xf32>
    %52 = arith.select %50, %35, %51 : vector<16x128xi1>, vector<16x128xf32>
    %cst_16 = arith.constant dense<0xFF800000> : vector<16xf32>
    %53 = vector.multi_reduction <maximumf>, %52, %cst_16 [1] : vector<16x128xf32> to vector<16xf32>
    %54 = vector.shape_cast %53 : vector<16xf32> to vector<16x1xf32>
    %55 = vector.broadcast %54 : vector<16x1xf32> to vector<16x128xf32>
    %56 = arith.subf %52, %55 : vector<16x128xf32>
    %57 = math.exp %56 : vector<16x128xf32>
    %cst_17 = arith.constant dense<0.000000e+00> : vector<16xf32>
    %58 = vector.multi_reduction <add>, %57, %cst_17 [1] : vector<16x128xf32> to vector<16xf32>
    %59 = vector.shape_cast %58 : vector<16xf32> to vector<16x1xf32>
    %60 = math.log %59 : vector<16x1xf32>
    %61 = arith.addf %60, %54 : vector<16x1xf32>
    %62 = vector.broadcast %38 : vector<16x1xi32> to vector<16x128xi32>
    %63 = arith.cmpi eq, %48, %62 : vector<16x128xi32>
    %cst_18 = arith.constant 0.000000e+00 : f32
    %64 = vector.broadcast %cst_18 : f32 to vector<16x128xf32>
    %65 = arith.select %63, %35, %64 : vector<16x128xi1>, vector<16x128xf32>
    %cst_19 = arith.constant dense<0.000000e+00> : vector<16xf32>
    %66 = vector.multi_reduction <add>, %65, %cst_19 [1] : vector<16x128xf32> to vector<16xf32>
    %67 = vector.shape_cast %66 : vector<16xf32> to vector<16x1xf32>
    %68 = arith.subf %61, %67 : vector<16x1xf32>
    %cst_20 = arith.constant 0.000000e+00 : f32
    %69 = vector.broadcast %cst_20 : f32 to vector<16x1xf32>
    %70 = arith.select %47, %68, %69 : vector<16x1xi1>, vector<16x1xf32>
    %cst_21 = arith.constant dense<0.000000e+00> : vector<1xf32>
    %71 = vector.multi_reduction <add>, %70, %cst_21 [0] : vector<16x1xf32> to vector<1xf32>
    %72 = vector.shape_cast %71 : vector<1xf32> to vector<1x1xf32>
    %73 = arith.extui %47 : vector<16x1xi1> to vector<16x1xi32>
    %74 = arith.sitofp %73 : vector<16x1xi32> to vector<16x1xf32>
    %cst_22 = arith.constant dense<0.000000e+00> : vector<1xf32>
    %75 = vector.multi_reduction <add>, %74, %cst_22 [0] : vector<16x1xf32> to vector<1xf32>
    %76 = vector.shape_cast %75 : vector<1xf32> to vector<1x1xf32>
    %77 = tpu.iota {dimensions = array<i32: 1>} : vector<1x128xi32>
    %c0_i32_23 = arith.constant 0 : i32
    %78 = vector.broadcast %c0_i32_23 : i32 to vector<1x128xi32>
    %79 = arith.cmpi eq, %77, %78 : vector<1x128xi32>
    %cst_24 = arith.constant 0.000000e+00 : f32
    %80 = vector.shape_cast %72 : vector<1x1xf32> to vector<1x1xf32>
    %81 = vector.broadcast %80 : vector<1x1xf32> to vector<1x128xf32>
    %82 = vector.broadcast %cst_24 : f32 to vector<1x128xf32>
    %83 = arith.select %79, %81, %82 : vector<1x128xi1>, vector<1x128xf32>
    %c1_i32 = arith.constant 1 : i32
    %84 = vector.broadcast %c1_i32 : i32 to vector<1x128xi32>
    %85 = arith.cmpi eq, %77, %84 : vector<1x128xi32>
    %cst_25 = arith.constant 0.000000e+00 : f32
    %86 = vector.shape_cast %76 : vector<1x1xf32> to vector<1x1xf32>
    %87 = vector.broadcast %86 : vector<1x1xf32> to vector<1x128xf32>
    %88 = vector.broadcast %cst_25 : f32 to vector<1x128xf32>
    %89 = arith.select %85, %87, %88 : vector<1x128xi1>, vector<1x128xf32>
    %90 = arith.addf %83, %89 : vector<1x128xf32>
    %c0_26 = arith.constant 0 : index
    %c0_27 = arith.constant 0 : index
    %c0_28 = arith.constant 0 : index
    %91 = vector.load %arg7[%c0_26, %c0_27, %c0_28] : memref<1x1x128xf32, #tpu.memory_space<vmem>>, vector<1x1x128xf32>
    %92 = vector.shape_cast %91 : vector<1x1x128xf32> to vector<1x128xf32>
    %93 = vector.shape_cast %90 : vector<1x128xf32> to vector<1x1x128xf32>
    tpu.vector_store %arg7[%c0_26, %c0_27, %c0_28], %93 {strides = array<i32>} : memref<1x1x128xf32, #tpu.memory_space<vmem>>, vector<1x1x128xf32>,
    return
  }
  func.func @transform_0(%arg0: i32) -> i32 {
    %c0_i32 = arith.constant 0 : i32
    %c0_i32_0 = arith.constant 0 : i32
    return %c0_i32 : i32
  }
  func.func @transform_1(%arg0: i32) -> (i32, i32) {
    %c0_i32 = arith.constant 0 : i32
    %c0_i32_0 = arith.constant 0 : i32
    return %arg0, %c0_i32 : i32, i32
  }
  func.func @transform_2(%arg0: i32) -> (i32, i32) {
    %c0_i32 = arith.constant 0 : i32
    %c0_i32_0 = arith.constant 0 : i32
    %c0_i32_1 = arith.constant 0 : i32
    return %c0_i32, %c0_i32_0 : i32, i32
  }
  func.func @transform_3(%arg0: i32) -> (i32, i32) {
    %c0_i32 = arith.constant 0 : i32
    %c0_i32_0 = arith.constant 0 : i32
    %c0_i32_1 = arith.constant 0 : i32
    return %c0_i32, %c0_i32_0 : i32, i32
  }
  func.func @transform_4(%arg0: i32) -> (i32, i32) {
    %c0_i32 = arith.constant 0 : i32
    %c0_i32_0 = arith.constant 0 : i32
    return %arg0, %c0_i32 : i32, i32
  }
  func.func @transform_5(%arg0: i32) -> (i32, i32) {
    %c0_i32 = arith.constant 0 : i32
    %c0_i32_0 = arith.constant 0 : i32
    return %arg0, %c0_i32 : i32, i32
  }
  func.func @transform_6(%arg0: i32) -> (i32, i32, i32) {
    %c0_i32 = arith.constant 0 : i32
    %c0_i32_0 = arith.constant 0 : i32
    %c0_i32_1 = arith.constant 0 : i32
    return %arg0, %c0_i32, %c0_i32_0 : i32, i32, i32
  }
}

</mosaic_0001>

<llo_original>
// kernel: ner_model_forward.1
$region0: #{ner_model_forward.1}
  #allocation0 [shape = 'u32[]', space=smem, size = 0x4, offset = 0x4, fixed_abs, tag = 'smem constant byte address 0x4 - core index']
  #allocation1 [shape = 'u32[144,128]{1,0:T(1,128)}', space=vmem, size = 0x12000, scoped, tag = 'internal scratch']
  #allocation2 [shape = 's32[1]{0:T(128)S(6)}', space=smem, size = 0x200, scoped, tag = 'scoped memory for ner_model_forward.1']
  %s0 = inlined_call_operand.<no memory space> [shape: s32[1], index: 0, kind: input, shape index: {}]
  %s1 = inlined_call_operand.vmem [shape: bf16[16,32], index: 1, kind: input, shape index: {}]
  %s2 = inlined_call_operand.vmem [shape: bf16[32,128], index: 2, kind: input, shape index: {}]
  %s3 = inlined_call_operand.vmem [shape: f32[1,128], index: 3, kind: input, shape index: {}]
  %s4 = inlined_call_operand.vmem [shape: s32[16,1], index: 4, kind: input, shape index: {}]
  %s5 = inlined_call_operand.vmem [shape: bf16[16,128], index: 5, kind: output, shape index: {0}]
  %s6 = inlined_call_operand.vmem [shape: f32[1,1,128], index: 6, kind: output, shape index: {1}]
  %7 = xla_tuple %s5, %s6
  %s8 = sld [smem:[#allocation0]]
  $region38: #{ner_model_forward.1} parent=0
    _
  %s10 = ssub.s32 1, %s8
  %s11 = scalar_select 0, %s10, %s8
  %12 = sst [smem:[#allocation2]] %s0
  // Predicated region
  $region2: #{ner_model_forward.1} parent=0 // pred_check
    _
  $region3: #{ner_model_forward.1} parent=0 // pred_check_branch
    %14 = sbr.rel (0) target = $region5
  $region4: #{ner_model_forward.1} parent=0 // pred_region
    _
  $region5: #{ner_model_forward.1} parent=0 // pred_fallthru
    _
  // Predicated region
  $region6: #{ner_model_forward.1} parent=0 // pred_check
    _
  $region7: #{ner_model_forward.1} parent=0 // pred_check_branch
    %16 = sbr.rel (0) target = $region9
  $region8: #{ner_model_forward.1} parent=0 // pred_region
    _
  $region9: #{ner_model_forward.1} parent=0 // pred_fallthru
    _
  // Predicated region
  $region10: #{ner_model_forward.1} parent=0 // pred_check
    _
  $region11: #{ner_model_forward.1} parent=0 // pred_check_branch
    %18 = sbr.rel (0) target = $region13
  $region12: #{ner_model_forward.1} parent=0 // pred_region
    _
  $region13: #{ner_model_forward.1} parent=0 // pred_fallthru
    _
  // Predicated region
  $region14: #{ner_model_forward.1} parent=0 // pred_check
    _
  $region15: #{ner_model_forward.1} parent=0 // pred_check_branch
    %20 = sbr.rel (0) target = $region17
  $region16: #{ner_model_forward.1} parent=0 // pred_region
    _
  $region17: #{ner_model_forward.1} parent=0 // pred_fallthru
    _
  // Predicated region
  $region18: #{ner_model_forward.1} parent=0 // pred_check
    _
  $region19: #{ner_model_forward.1} parent=0 // pred_check_branch
    %22 = sbr.rel (0) target = $region21
  $region20: #{ner_model_forward.1} parent=0 // pred_region
    _
  $region21: #{ner_model_forward.1} parent=0 // pred_fallthru
    _
  %v25 = vld [vmem:[%s1] sm:$0xf]
  %v26 = vld [vmem:[%s1 + $0x4] sm:$0xf]
  %s27 = sld [smem:[#allocation2]]
  %s28 = smul.u32 0, 512
  %s29 = smul.u32 %s27, 2654435769
  %s30 = sadd.s32 %s28, %s29
  %v31 = vlaneseq
  %v32 = vshrl.u32 %v31, 7
  %v33 = vadd.s32 %v32, 8
  %v34 = vlaneseq
  %v35 = vand.u32 %v34, 127
  %v36 = vmul.u32 %v32, 32
  %v37 = vmul.u32 %v33, 32
  %v38 = vadd.s32 %v36, %v35
  %v39 = vadd.s32 %v37, %v35
  %v40 = vstv %s30
  %v41 = vadd.s32 %v38, %v40
  %v42 = vadd.s32 %v39, %v40
  %v43 = vshrl.u32 %v41, 16
  %v44 = vshrl.u32 %v42, 16
  %v45 = vxor.u32 %v41, %v43
  %v46 = vxor.u32 %v42, %v44
  %v47 = vmul.u32 %v45, 2146121005
  %v48 = vmul.u32 %v46, 2146121005
  %v49 = vshrl.u32 %v47, 15
  %v50 = vshrl.u32 %v48, 15
  %v51 = vxor.u32 %v47, %v49
  %v52 = vxor.u32 %v48, %v50
  %v53 = vmul.u32 %v51, 2221713035
  %v54 = vmul.u32 %v52, 2221713035
  %v55 = vshrl.u32 %v53, 16
  %v56 = vshrl.u32 %v54, 16
  %v57 = vxor.u32 %v53, %v55
  %v58 = vxor.u32 %v54, %v56
  %vm59 = vcmp.ge.u32.totalorder %v57, 429496730
  %vm60 = vcmp.ge.u32.totalorder %v58, 429496730
  %v61 = vmul.bf16 %v25, 1066286990
  %v62 = vmul.bf16 %v26, 1066286990
  %vm63 = vmpackc.low %vm59, %vm59
  %vm64 = vmpackc.low %vm60, %vm60
  %v65 = vsel %vm63, %v61, 0
  %v66 = vsel %vm64, %v62, 0
  %v67 = vld [vmem:[%s2] sm:$0xf]
  %v68 = vld [vmem:[%s2 + $0x4] sm:$0xf]
  %v69 = vld [vmem:[%s2 + $0x8] sm:$0xf]
  %v70 = vld [vmem:[%s2 + $0xc] sm:$0xf]
  %v71 = vld [vmem:[%s3] sm:$0x1]
  %v73 = vlaneseq
  %v74 = vshrl.u32 %v73, 7
  %v75 = vsub.s32 0, %v74
  %v76 = vrot.slane %v71, %v75
  %v80 = vunpack.c.l.b16 %v65
  %v81 = vunpack.c.l.b16 %v66
  %v82 = vpack.c.b16 %v81, %v80
  %v87 = vunpack.c.l.b16 %v67
  %v88 = vunpack.c.l.b16 %v68
  %v89 = vunpack.c.l.b16 %v69
  %v90 = vunpack.c.l.b16 %v70
  %v91 = vpack.c.b16 %v88, %v87
  %v92 = vpack.c.b16 %v90, %v89
  %vm95 = vcmask 261120
  %v97 = vsel %vm95, %v82, 0
  %99 = vmatprep.subr.bf16.mxu0 0
  %100 = vmatpush1.bf16.msra.mxu0 0
  %101 = vmatprep.subr.bf16.mxu0 0
  %102 = vmatpush1.bf16.msra.mxu0 0
  %103 = vmatprep.subr.bf16.mxu0 0
  %104 = vmatpush1.bf16.msra.mxu0 0
  %105 = vmatprep.subr.bf16.mxu0 0
  %106 = vmatpush1.bf16.msra.mxu0 0
  %107 = vmatprep.subr.bf16.mxu0 0
  %108 = vmatpush1.bf16.msra.mxu0 0
  %109 = vmatprep.subr.bf16.mxu0 0
  %110 = vmatpush1.bf16.msra.mxu0 0
  %111 = vmatprep.subr.bf16.mxu0 0
  %112 = vmatpush1.bf16.msra.mxu0 %v92
  %113 = vmatprep.subr.bf16.mxu0 0
  %114 = vmatpush1.bf16.msra.mxu0 %v91
  %115 = vmatprep.subr.bf16.mxu0 0
  %116 = vmatpush2.bf16.msra.mxu0 0
  %117 = vmatprep.subr.bf16.mxu0 0
  %118 = vmatpush2.bf16.msra.mxu0 0
  %119 = vmatprep.subr.bf16.mxu0 0
  %120 = vmatpush2.bf16.msra.mxu0 0
  %121 = vmatprep.subr.bf16.mxu0 0
  %122 = vmatpush2.bf16.msra.mxu0 0
  %123 = vmatprep.subr.bf16.mxu0 0
  %124 = vmatpush2.bf16.msra.mxu0 0
  %125 = vmatprep.subr.bf16.mxu0 0
  %126 = vmatpush2.bf16.msra.mxu0 0
  %127 = vmatprep.subr.bf16.mxu0 0
  %128 = vmatpush2.bf16.msra.mxu0 0
  %129 = vmatprep.subr.bf16.mxu0 0
  %130 = vmatpush2.bf16.msra.mxu0 0
  %131 = vmatprep.mubr.bf16.mxu0 0
  %132 = vmatmul.mubr.bf16.gmra.mxu0 %v97
  %v133 = vpop.f32.mrf.mxu0
  %v134 = vadd.f32 %v76, %v133
  %v135 = vpop.f32.mrf.mxu0
  %v136 = vpop.f32.mrf.mxu0
  %v137 = vadd.f32 %v76, %v136
  %v138 = vpop.f32.mrf.mxu0
  %139 = vdwg.mxu0
  %v140 = vpack.c.bf16 %v137, %v134
  %v142 = vunpack.c.l.b16 %v140
  %v143 = vunpack.c.h.b16 %v140
  %v144 = vpack.c.b16 %v142, %v142
  %v145 = vpack.c.b16 %v143, %v143
  %148 = vst [vmem:[%s5] sm:$0xf] %v144
  %149 = vst [vmem:[%s5 + $0x4] sm:$0xf] %v145
  %v150 = vld [vmem:[%s4] sm:$0xff]
  %v151 = vld [vmem:[%s4 + $0x8] sm:$0xff]
  %s152 = smul.u32 0, 16
  %v153 = vstv %s152
  %v154 = vadd.s32 %v153, %v32
  %v155 = vadd.s32 %v153, %v33
  %vm156 = vcmp.lt.s32.totalorder %v154, 16
  %vm157 = vcmp.lt.s32.totalorder %v155, 16
  %vm158 = vcmp.ge.s32.totalorder %v150, 0
  %vm159 = vcmp.ge.s32.totalorder %v151, 0
  %vm160 = vmand %vm158, %vm156
  %vm161 = vmand %vm159, %vm157
  %vm162 = vcmp.lt.s32.totalorder %v35, 4
  %v163 = vsel %vm162, %v134, -1e+30
  %v164 = vsel %vm162, %v137, -1e+30
  %165 = vmax.xlane.f32.xlu0 %v163
  %v166 = vpop.xlane.xlu0 %165
  %167 = vmax.xlane.f32.xlu0 %v164
  %v168 = vpop.xlane.xlu0 %167
  %v169 = vsub.f32 %v163, %v166
  %v170 = vsub.f32 %v164, %v168
  %v171 = vmul.f32 %v169, 1.442695
  %v172 = vpow.pop %v171
  %v173 = vmul.f32 %v170, 1.442695
  %v174 = vpow.pop %v173
  %175 = vadd.xlane.f32.xlu0 %v172
  %v176 = vpop.xlane.xlu0 %175
  %177 = vadd.xlane.f32.xlu0 %v174
  %v178 = vpop.xlane.xlu0 %177
  %v179 = vlog2.pop %v176
  %v180 = vmul.f32 %v179, 0.6931472
  %v181 = vlog2.pop %v178
  %v182 = vmul.f32 %v181, 0.6931472
  %v183 = vadd.f32 %v180, %v166
  %v184 = vadd.f32 %v182, %v168
  %185 = vset.pattern.permute.xlu0 0
  %186 = vperm.xlu0 %185, %v150
  %v187 = vpop.permute.xlu0 %186
  %188 = vset.pattern.permute.xlu0 0
  %189 = vperm.xlu0 %188, %v151
  %v190 = vpop.permute.xlu0 %189
  %vm191 = vcmp.eq.s32.totalorder %v35, %v187
  %vm192 = vcmp.eq.s32.totalorder %v35, %v190
  %v193 = vsel %vm191, %v134, 0.0
  %v194 = vsel %vm192, %v137, 0.0
  %195 = vadd.xlane.f32.xlu0 %v193
  %v196 = vpop.xlane.xlu0 %195
  %197 = vadd.xlane.f32.xlu0 %v194
  %v198 = vpop.xlane.xlu0 %197
  %v199 = vsub.f32 %v183, %v196
  %v200 = vsub.f32 %v184, %v198
  %v201 = vsel %vm160, %v199, 0.0
  %v202 = vsel %vm161, %v200, 0.0
  %vm203 = vcmask 7168
  %v204 = vsel %vm203, %v201, 0.0
  %v205 = vsel %vm203, %v202, 0.0
  %v206 = vadd.f32 %v204, %v205
  %v207 = vrot.slane %v206, 4
  %v208 = vadd.f32 %v206, %v207
  %v209 = vrot.slane %v208, 2
  %v210 = vadd.f32 %v208, %v209
  %v211 = vrot.slane %v210, 1
  %v212 = vadd.f32 %v210, %v211
  %v213 = vsel %vm160, 1, 0
  %v214 = vsel %vm161, 1, 0
  %v215 = vcvt.s32.f32 %v213
  %v216 = vcvt.s32.f32 %v214
  %v217 = vsel %vm203, %v215, 0.0
  %v218 = vsel %vm203, %v216, 0.0
  %v219 = vadd.f32 %v217, %v218
  %v220 = vrot.slane %v219, 4
  %v221 = vadd.f32 %v219, %v220
  %v222 = vrot.slane %v221, 2
  %v223 = vadd.f32 %v221, %v222
  %v224 = vrot.slane %v223, 1
  %v225 = vadd.f32 %v223, %v224
  %vm226 = vcmp.eq.s32.totalorder %v35, 0
  %228 = vset.pattern.permute.xlu0 0
  %229 = vperm.xlu0 %228, %v212
  %v230 = vpop.permute.xlu0 %229
  %v232 = vsel %vm226, %v230, 0.0
  %vm233 = vcmp.eq.s32.totalorder %v35, 1
  %235 = vset.pattern.permute.xlu0 0
  %236 = vperm.xlu0 %235, %v225
  %v237 = vpop.permute.xlu0 %236
  %v239 = vsel %vm233, %v237, 0.0
  %v240 = vadd.f32 %v232, %v239
  %241 = vst [vmem:[%s6] sm:$0x1] %v240
  // Predicated region
  $region22: #{ner_model_forward.1} parent=0 // pred_check
    _
  $region23: #{ner_model_forward.1} parent=0 // pred_check_branch
    %243 = sbr.rel (0) target = $region25
  $region24: #{ner_model_forward.1} parent=0 // pred_region
    _
  $region25: #{ner_model_forward.1} parent=0 // pred_fallthru
    _
  // Predicated region
  $region26: #{ner_model_forward.1} parent=0 // pred_check
    _
  $region27: #{ner_model_forward.1} parent=0 // pred_check_branch
    %245 = sbr.rel (0) target = $region29
  $region28: #{ner_model_forward.1} parent=0 // pred_region
    _
  $region29: #{ner_model_forward.1} parent=0 // pred_fallthru
    _
  // Predicated region
  $region30: #{ner_model_forward.1} parent=0 // pred_check
    _
  $region31: #{ner_model_forward.1} parent=0 // pred_check_branch
    %247 = sbr.rel (0) target = $region33
  $region32: #{ner_model_forward.1} parent=0 // pred_region
    _
  $region33: #{ner_model_forward.1} parent=0 // pred_fallthru
    _
  // Predicated region
  $region34: #{ner_model_forward.1} parent=0 // pred_check
    _
  $region35: #{ner_model_forward.1} parent=0 // pred_check_branch
    %249 = sbr.rel (0) target = $region37
  $region36: #{ner_model_forward.1} parent=0 // pred_region
    _
  $region37: #{ner_model_forward.1} parent=0 // pred_fallthru
    _

</llo_original>
